<compile_context>
chip_gen: v7x
topology: tpu7x:2x2x1
jax: 0.10.0
libtpu: 0.0.40
codegen_flags: <defaults>
</compile_context>

<pallas_src>
import jax
import jax.numpy as jnp
from jax.experimental import pallas as pl
from jax.experimental.pallas import tpu as pltpu


def _fusion_kernel(h_ref, conv_ref, w_ref, b_ref, out_ref, fused_ref):
    # h_ref:    (P, tn8, Dp)  streamed tile of packed metapath features (Dp = pack*D)
    # conv_ref: (P, Dp)       per-metapath fusion weights (f32, resident)
    # w_ref:    (Dp, Op)      block-diagonal linear weight (f32, resident, Op = pack*O)
    # b_ref:    (1, Op)       tiled linear bias (f32, resident)
    P = h_ref.shape[0]
    conv = conv_ref[...]                                   # tiny, resident
    # Unrolled accumulation over the (small, static) metapath axis in f32 — VPU work,
    # no (P, tn8, Dp) product temporary; up-cast is a no-op on the f32 path.
    fused = h_ref[0].astype(jnp.float32) * conv[0][None, :]
    for p in range(1, P):
        fused = fused + h_ref[p].astype(jnp.float32) * conv[p][None, :]
    fused_ref[...] = fused.astype(fused_ref.dtype)
    # Linear layer on the MXU: (tn8, Dp) @ (Dp, Op), f32 accumulation.
    out = jnp.dot(fused, w_ref[...], preferred_element_type=jnp.float32) + b_ref[...]
    out_ref[...] = out.astype(out_ref.dtype)


def _round_down8(x):
    return (x // 8) * 8


def _pick_tile_rows(n_rows, bytes_per_row, *, target_tile_bytes, min_steps):
    """Packed-row tile: <= target_tile_bytes of streamed h per step, >= min_steps grid steps."""
    if n_rows <= 8:
        return n_rows                       # tiny problem: single full-extent step
    by_bytes = _round_down8(target_tile_bytes // max(bytes_per_row, 1))
    by_steps = _round_down8(pl.cdiv(n_rows, min_steps))
    t = min(by_bytes, by_steps, _round_down8(n_rows))
    return max(8, t)


def _vmem_capacity_bytes():
    try:
        return int(pltpu.get_tpu_info().vmem_capacity_bytes)
    except Exception:
        return 64 << 20                     # conservative: v7x per-TC VMEM


def metapath_fusion_conv(h_stack, conv, w, b, *, pack=8, tile_bytes=4 << 20,
                         io_dtype=None, min_steps=4):
    """h_stack: (P, N, D); conv: (P, D); w: (D, O) (= W.T); b: (O,).
    Returns (out (N, O), fused (N, D)) matching MetapathFusion(fusion_type='conv').
    io_dtype (e.g. jnp.bfloat16) controls the streamed h/fused/out dtype; params stay f32."""
    P, N, D = h_stack.shape
    O = w.shape[1]
    io_dtype = h_stack.dtype if io_dtype is None else jnp.dtype(io_dtype)
    io_size = jnp.dtype(io_dtype).itemsize

    # ---- pad the node axis so it packs evenly; padded rows are sliced off at the end ----
    n_pad = (-N) % pack
    if n_pad:
        h_stack = jnp.pad(h_stack, ((0, 0), (0, n_pad), (0, 0)))
    Np = N + n_pad
    N8 = Np // pack
    Dp = pack * D            # packed feature width (lane-dense)
    Op = pack * O            # packed output width

    # ---- trace-time layout prep (all free / one-off) ----
    h8 = h_stack.astype(io_dtype).reshape(P, N8, Dp)           # 8 nodes per row
    conv8 = jnp.tile(conv.astype(jnp.float32), (1, pack))      # (P, Dp)
    w_blk = jnp.kron(jnp.eye(pack, dtype=jnp.float32),
                     w.astype(jnp.float32))                    # (Dp, Op) block-diagonal
    b8 = jnp.tile(b.astype(jnp.float32).reshape(1, O), (1, pack))   # (1, Op)

    # ---- node-tile: ~2-4 MiB streamed h per step, >= min_steps (>= 2 per TC) grid steps ----
    h_bytes_per_row = P * Dp * io_size
    tn8 = _pick_tile_rows(N8, h_bytes_per_row,
                          target_tile_bytes=tile_bytes, min_steps=min_steps)
    grid = (pl.cdiv(N8, tn8),)              # ragged last block handled by Pallas masking

    # ---- explicit scoped-VMEM limit from real double-buffered usage (+ headroom) ----
    vmem_usage = (
        2 * P * tn8 * Dp * io_size          # h tile, double-buffered
        + 2 * tn8 * (Dp + Op) * io_size     # fused + out tiles, double-buffered
        + 2 * (P * Dp + Dp * Op + Op) * 4   # resident f32 conv/w/bias (still 2 buffers)
    )
    vmem_limit = int(min(max(vmem_usage + (4 << 20), 16 << 20),
                         _vmem_capacity_bytes() // 2))

    cost = pl.CostEstimate(
        flops=2 * N8 * Dp * Op,             # the packed block-diagonal matmul actually issued
        transcendentals=0,
        bytes_accessed=io_size * (P * Np * D + Np * D + Np * O)
                       + 4 * (P * Dp + Dp * Op + Op),
    )

    out8, fused8 = pl.pallas_call(
        _fusion_kernel,
        out_shape=(
            jax.ShapeDtypeStruct((N8, Op), io_dtype),
            jax.ShapeDtypeStruct((N8, Dp), io_dtype),
        ),
        grid_spec=pltpu.PrefetchScalarGridSpec(
            num_scalar_prefetch=0,
            grid=grid,
            in_specs=[
                pl.BlockSpec((P, tn8, Dp), lambda i: (0, i, 0)),   # streamed h tile
                pl.BlockSpec((P, Dp), lambda i: (0, 0)),           # conv (resident)
                pl.BlockSpec((Dp, Op), lambda i: (0, 0)),          # block-diag weight (resident)
                pl.BlockSpec((1, Op), lambda i: (0, 0)),           # bias (resident)
            ],
            out_specs=[
                pl.BlockSpec((tn8, Op), lambda i: (i, 0)),
                pl.BlockSpec((tn8, Dp), lambda i: (i, 0)),
            ],
        ),
        compiler_params=pltpu.CompilerParams(
            dimension_semantics=("parallel",),    # node axis shards across TCs (megacore)
            vmem_limit_bytes=vmem_limit,
        ),
        cost_estimate=cost,
    )(h8, conv8, w_blk, b8)

    # free row-major reshapes back to the module's output layout; drop node padding
    out = out8.reshape(Np, O)[:N]
    fused = fused8.reshape(Np, D)[:N]
    return out, fused


def _reference(h_stack, conv, w, b):
    # pure-JAX mirror of the PyTorch forward (fusion_type='conv')
    fused = jnp.sum(jnp.transpose(h_stack, (1, 0, 2)) * conv, axis=1)
    return fused @ w + b, fused


if __name__ == "__main__":
    # module hyperparams (small, consistent with the forward)
    n_metapaths = 3
    in_dim = 32
    out_dim = 16
    n_nodes = 2048       # -> 256 packed rows, tile 64 -> 4 pipelined grid steps

    key = jax.random.PRNGKey(0)
    k_h, k_w, k_b = jax.random.split(key, 3)

    # h_list equivalent: stacked (P, N, D)
    h_stack = jax.random.normal(k_h, (n_metapaths, n_nodes, in_dim), dtype=jnp.float32)

    # parameters, deterministic in-script
    # self.conv = th.full((n_metapaths, in_dim), 1/n_metapaths)
    conv = jnp.full((n_metapaths, in_dim), 1.0 / n_metapaths, dtype=jnp.float32)
    # nn.Linear(in_dim, out_dim): deterministic uniform init; w = W.T
    bound = 1.0 / (in_dim ** 0.5)
    w = jax.random.uniform(k_w, (in_dim, out_dim), jnp.float32, -bound, bound)
    b = jax.random.uniform(k_b, (out_dim,), jnp.float32, -bound, bound)

    ref_out, ref_fused = _reference(h_stack, conv, w, b)

    # f32 path (exact-semantics check)
    out, fused = metapath_fusion_conv(h_stack, conv, w, b)
    jax.block_until_ready((out, fused))
    assert jnp.allclose(out, ref_out, atol=1e-5, rtol=1e-5)
    assert jnp.allclose(fused, ref_fused, atol=1e-5, rtol=1e-5)

    # bf16 streaming path (bandwidth-bound kernel -> ~2x fewer HBM bytes); looser tolerance
    out16, fused16 = metapath_fusion_conv(h_stack, conv, w, b, io_dtype=jnp.bfloat16)
    jax.block_until_ready((out16, fused16))
    assert jnp.allclose(out16.astype(jnp.float32), ref_out, atol=5e-2, rtol=5e-2)
    assert jnp.allclose(fused16.astype(jnp.float32), ref_fused, atol=5e-2, rtol=5e-2)

    print("KERNEL_OK")
</pallas_src>

<mosaic_0001>
module attributes {stable_mosaic.version = 11 : i64} {
  func.func @_fusion_kernel(%arg0: i32, %arg1: memref<3x64x256xf32, #tpu.memory_space<vmem>>, %arg2: memref<3x256xf32, #tpu.memory_space<vmem>>, %arg3: memref<256x128xf32, #tpu.memory_space<vmem>>, %arg4: memref<1x128xf32, #tpu.memory_space<vmem>>, %arg5: memref<64x128xf32, #tpu.memory_space<vmem>>, %arg6: memref<64x256xf32, #tpu.memory_space<vmem>>) attributes {dimension_semantics = [#tpu.dimension_semantics<parallel>], iteration_bounds = array<i64: 4>, scalar_prefetch = 0 : i64, scratch_operands = 0 : i64, tpu.core_type = #tpu.core_type<tc>, window_params = [{transform_indices = @transform_0, window_bounds = array<i64: 3, 64, 256>}, {pipeline_mode = #tpu.pipeline_mode<synchronous>, transform_indices = @transform_1, window_bounds = array<i64: 3, 256>}, {pipeline_mode = #tpu.pipeline_mode<synchronous>, transform_indices = @transform_2, window_bounds = array<i64: 256, 128>}, {pipeline_mode = #tpu.pipeline_mode<synchronous>, transform_indices = @transform_3, window_bounds = array<i64: 1, 128>}, {transform_indices = @transform_4, window_bounds = array<i64: 64, 128>}, {transform_indices = @transform_5, window_bounds = array<i64: 64, 256>}]} {
    %c0 = arith.constant 0 : index
    %c0_0 = arith.constant 0 : index
    %0 = vector.load %arg2[%c0, %c0_0] : memref<3x256xf32, #tpu.memory_space<vmem>>, vector<3x256xf32>
    %c0_1 = arith.constant 0 : index
    %c0_2 = arith.constant 0 : index
    %c0_3 = arith.constant 0 : index
    %1 = vector.load %arg1[%c0_1, %c0_2, %c0_3] : memref<3x64x256xf32, #tpu.memory_space<vmem>>, vector<1x64x256xf32>
    %2 = vector.shape_cast %1 : vector<1x64x256xf32> to vector<64x256xf32>
    %3 = vector.extract_strided_slice %0 {offsets = [0, 0], sizes = [1, 256], strides = [1, 1]} : vector<3x256xf32> to vector<1x256xf32>
    %4 = vector.shape_cast %3 : vector<1x256xf32> to vector<256xf32>
    %5 = vector.shape_cast %4 : vector<256xf32> to vector<1x256xf32>
    %6 = vector.broadcast %5 : vector<1x256xf32> to vector<64x256xf32>
    %7 = arith.mulf %2, %6 : vector<64x256xf32>
    %c1 = arith.constant 1 : index
    %c0_4 = arith.constant 0 : index
    %c0_5 = arith.constant 0 : index
    %8 = vector.load %arg1[%c1, %c0_4, %c0_5] : memref<3x64x256xf32, #tpu.memory_space<vmem>>, vector<1x64x256xf32>
    %9 = vector.shape_cast %8 : vector<1x64x256xf32> to vector<64x256xf32>
    %10 = vector.extract_strided_slice %0 {offsets = [1, 0], sizes = [1, 256], strides = [1, 1]} : vector<3x256xf32> to vector<1x256xf32>
    %11 = vector.shape_cast %10 : vector<1x256xf32> to vector<256xf32>
    %12 = vector.shape_cast %11 : vector<256xf32> to vector<1x256xf32>
    %13 = vector.broadcast %12 : vector<1x256xf32> to vector<64x256xf32>
    %14 = arith.mulf %9, %13 : vector<64x256xf32>
    %15 = arith.addf %7, %14 : vector<64x256xf32>
    %c2 = arith.constant 2 : index
    %c0_6 = arith.constant 0 : index
    %c0_7 = arith.constant 0 : index
    %16 = vector.load %arg1[%c2, %c0_6, %c0_7] : memref<3x64x256xf32, #tpu.memory_space<vmem>>, vector<1x64x256xf32>
    %17 = vector.shape_cast %16 : vector<1x64x256xf32> to vector<64x256xf32>
    %18 = vector.extract_strided_slice %0 {offsets = [2, 0], sizes = [1, 256], strides = [1, 1]} : vector<3x256xf32> to vector<1x256xf32>
    %19 = vector.shape_cast %18 : vector<1x256xf32> to vector<256xf32>
    %20 = vector.shape_cast %19 : vector<256xf32> to vector<1x256xf32>
    %21 = vector.broadcast %20 : vector<1x256xf32> to vector<64x256xf32>
    %22 = arith.mulf %17, %21 : vector<64x256xf32>
    %23 = arith.addf %15, %22 : vector<64x256xf32>
    %c0_8 = arith.constant 0 : index
    %c0_9 = arith.constant 0 : index
    %24 = vector.load %arg6[%c0_8, %c0_9] : memref<64x256xf32, #tpu.memory_space<vmem>>, vector<64x256xf32>
    tpu.vector_store %arg6[%c0_8, %c0_9], %23 {strides = array<i32>} : memref<64x256xf32, #tpu.memory_space<vmem>>, vector<64x256xf32>,
    %c0_10 = arith.constant 0 : index
    %c0_11 = arith.constant 0 : index
    %25 = vector.load %arg3[%c0_10, %c0_11] : memref<256x128xf32, #tpu.memory_space<vmem>>, vector<256x128xf32>
    %cst = arith.constant dense<0.000000e+00> : vector<64x128xf32>
    %26 = tpu.matmul %23, %25, %cst {dimension_numbers = #tpu.dot_dimension_numbers<[1], [0], [0], [1], [0, 0, 1, 1], [], []>} : vector<64x256xf32>, vector<256x128xf32>, vector<64x128xf32> -> vector<64x128xf32>
    %c0_12 = arith.constant 0 : index
    %c0_13 = arith.constant 0 : index
    %27 = vector.load %arg4[%c0_12, %c0_13] : memref<1x128xf32, #tpu.memory_space<vmem>>, vector<1x128xf32>
    %28 = vector.broadcast %27 : vector<1x128xf32> to vector<64x128xf32>
    %29 = arith.addf %26, %28 : vector<64x128xf32>
    %c0_14 = arith.constant 0 : index
    %c0_15 = arith.constant 0 : index
    %30 = vector.load %arg5[%c0_14, %c0_15] : memref<64x128xf32, #tpu.memory_space<vmem>>, vector<64x128xf32>
    tpu.vector_store %arg5[%c0_14, %c0_15], %29 {strides = array<i32>} : memref<64x128xf32, #tpu.memory_space<vmem>>, vector<64x128xf32>,
    return
  }
  func.func @transform_0(%arg0: i32) -> (i32, i32, i32) {
    %c0_i32 = arith.constant 0 : i32
    %c0_i32_0 = arith.constant 0 : i32
    %c0_i32_1 = arith.constant 0 : i32
    return %c0_i32, %arg0, %c0_i32_0 : i32, i32, i32
  }
  func.func @transform_1(%arg0: i32) -> (i32, i32) {
    %c0_i32 = arith.constant 0 : i32
    %c0_i32_0 = arith.constant 0 : i32
    %c0_i32_1 = arith.constant 0 : i32
    return %c0_i32, %c0_i32_0 : i32, i32
  }
  func.func @transform_2(%arg0: i32) -> (i32, i32) {
    %c0_i32 = arith.constant 0 : i32
    %c0_i32_0 = arith.constant 0 : i32
    %c0_i32_1 = arith.constant 0 : i32
    return %c0_i32, %c0_i32_0 : i32, i32
  }
  func.func @transform_3(%arg0: i32) -> (i32, i32) {
    %c0_i32 = arith.constant 0 : i32
    %c0_i32_0 = arith.constant 0 : i32
    %c0_i32_1 = arith.constant 0 : i32
    return %c0_i32, %c0_i32_0 : i32, i32
  }
  func.func @transform_4(%arg0: i32) -> (i32, i32) {
    %c0_i32 = arith.constant 0 : i32
    %c0_i32_0 = arith.constant 0 : i32
    return %arg0, %c0_i32 : i32, i32
  }
  func.func @transform_5(%arg0: i32) -> (i32, i32) {
    %c0_i32 = arith.constant 0 : i32
    %c0_i32_0 = arith.constant 0 : i32
    return %arg0, %c0_i32 : i32, i32
  }
}

</mosaic_0001>

<llo_original>
// kernel: tpu_custom_call.1
$region0: #{tpu_custom_call.1}
  #allocation0 [shape = 'u32[]', space=smem, size = 0x4, offset = 0x4, fixed_abs, tag = 'smem constant byte address 0x4 - core index']
  #allocation1 [shape = 'u32[144,128]{1,0:T(1,128)}', space=vmem, size = 0x12000, scoped, tag = 'internal scratch']
  #allocation11 [shape = 's32[]', space=sflag, size = 0x4, offset = 0, fixed_abs, tag = 'sflag constant byte address 0x0 - dummy sync flag']
  %s0 = inlined_call_operand.hbm [shape: f32[3,256,256], index: 0, kind: input, shape index: {}]
  %s1 = inlined_call_operand.hbm [shape: f32[3,256], index: 1, kind: input, shape index: {}]
  %s2 = inlined_call_operand.hbm [shape: f32[256,128], index: 2, kind: input, shape index: {}]
  %s3 = inlined_call_operand.vmem [shape: f32[1,128], index: 3, kind: input, shape index: {}]
  %s4 = inlined_call_operand.hbm [shape: f32[256,128], index: 4, kind: output, shape index: {0}]
  %s5 = inlined_call_operand.hbm [shape: f32[256,256], index: 5, kind: output, shape index: {1}]
  %6 = xla_tuple %s4, %s5
  %s7 = sld [smem:[#allocation0]]
  $region69: #{tpu_custom_call.1} parent=0
    _
  %s9 = ssub.s32 1, %s7
  %s10 = scalar_select 0, %s9, %s7
  $region1: #{tpu_custom_call.1} parent=0
    #allocation2 [shape = 'u8[393216]{0}', space=vmem, size = 0x60000, scoped, tag = 'input window, operand 0']
    #allocation3 [shape = 's32[2]{0}', space=sflag, size = 0x8, scoped, tag = 'scoped memory for tpu_custom_call.1']
    #allocation4 [shape = 's32[2]{0}', space=sflag, size = 0x8, scoped, tag = 'scoped memory for tpu_custom_call.1']
    #allocation5 [shape = 'u8[4096]{0}', space=vmem, size = 0x1000, scoped, tag = 'input window, operand 1, single buffered']
    #allocation6 [shape = 's32[1]{0}', space=sflag, size = 0x4, scoped, tag = 'scoped memory for tpu_custom_call.1']
    #allocation7 [shape = 'u8[131072]{0}', space=vmem, size = 0x20000, scoped, tag = 'input window, operand 2, single buffered']
    #allocation8 [shape = 'u8[65536]{0}', space=vmem, size = 0x10000, scoped, tag = 'output window, operand 0']
    #allocation9 [shape = 'u8[131072]{0}', space=vmem, size = 0x20000, scoped, tag = 'output window, operand 1']
    #allocation10 [shape = 's32[2]{0}', space=sflag, size = 0x8, scoped, tag = 'scoped memory for tpu_custom_call.1']
    %11 = vsyncpa [#allocation3], 0
    %s12 = scalar_lea.sflag [#allocation3], 1
    %13 = vsyncpa %s12, 0
    %14 = vsyncpa [#allocation6], 0
    %15 = vsyncpa [#allocation4], 0
    %s16 = scalar_lea.sflag [#allocation4], 1
    %17 = vsyncpa %s16, 0
    %18 = vsyncpa [#allocation10], 0
    %s19 = scalar_lea.sflag [#allocation10], 1
    %20 = vsyncpa %s19, 0
    loop: start=0, step=1, limit=6
    $region2: #{tpu_custom_call.1} parent=1 // loop_pre_header
      _
    $region3: #{tpu_custom_call.1} parent=1 // loop_header
      %s22 = sphi 0, %s26
      %p23 = scmp.ge.s32.totalorder %s22, 6
      %s32 = sphi 0, %s34
      %s35 = sphi 0, %s32
      %s36 = sphi 0, %s35
      %s52 = sphi 0, %s36
      %s56 = sphi 0, %s56
      %s58 = sphi 0, %s56
      %s59 = sphi 0, %s58
      %s73 = sphi 0, %s59
      %s77 = sphi 0, %s77
      %s79 = sphi 0, %s77
      %s80 = sphi 0, %s79
      %s94 = sphi 0, %s80
      %s98 = sphi 0, %s98
      %s100 = sphi 0, %s98
      %s101 = sphi 0, %s100
      %s115 = sphi 0, %s101
      %s121 = sphi 0, %s123
      %s124 = sphi 0, %s121
      %s125 = sphi 0, %s124
      %s141 = sphi 0, %s125
      %s147 = sphi 0, %s149
      %s150 = sphi 0, %s147
      %s151 = sphi 0, %s150
      %s167 = sphi 0, %s151
    $region4: #{tpu_custom_call.1} parent=1 // loop_header_branch
      %25 = sbr.rel (%p23) target = $region8
    $region5: #{tpu_custom_call.1} parent=1 // loop_body
      %s27 = ssub.s32 %s22, 1
      %s28 = ssub.s32 %s22, 2
      %s29 = sadd.s32 %s22, 1
      %s30 = ssub.s32 %s22, %s29
      %p31 = scmp.eq.s32.totalorder %s30, 0
      %s33 = sadd.s32 %s32, 1
      %s34 = scalar_select %p31, %s32, %s33
      %p37 = pneg %p31
      %p38 = scmp.eq.s32.totalorder %s22, 3
      %p39 = por %p37, %p38
      %p40 = scmp.ne.s32.totalorder %s32, %s35
      %p41 = scmp.eq.s32.totalorder %s22, 0
      %p42 = por %p40, %p41
      %p43 = scmp.ne.s32.totalorder %s32, %s35
      %p44 = scmp.eq.s32.totalorder %s27, 3
      %p45 = por %p43, %p44
      %p46 = scmp.ne.s32.totalorder %s35, %s36
      %p47 = scmp.eq.s32.totalorder %s27, 0
      %p48 = por %p46, %p47
      %p49 = scmp.ne.s32.totalorder %s35, %s36
      %p50 = scmp.eq.s32.totalorder %s28, 3
      %p51 = por %p49, %p50
      %p53 = scmp.ne.s32.totalorder %s36, %s52
      %p54 = scmp.eq.s32.totalorder %s28, 0
      %p55 = por %p53, %p54
      %s57 = sadd.s32 %s56, 1
      %p60 = scmp.eq.s32.totalorder %s22, 3
      %p61 = scmp.ne.s32.totalorder %s56, %s58
      %p62 = scmp.eq.s32.totalorder %s22, 0
      %p63 = por %p61, %p62
      %p64 = scmp.ne.s32.totalorder %s56, %s58
      %p65 = scmp.eq.s32.totalorder %s27, 3
      %p66 = por %p64, %p65
      %p67 = scmp.ne.s32.totalorder %s58, %s59
      %p68 = scmp.eq.s32.totalorder %s27, 0
      %p69 = por %p67, %p68
      %p70 = scmp.ne.s32.totalorder %s58, %s59
      %p71 = scmp.eq.s32.totalorder %s28, 3
      %p72 = por %p70, %p71
      %p74 = scmp.ne.s32.totalorder %s59, %s73
      %p75 = scmp.eq.s32.totalorder %s28, 0
      %p76 = por %p74, %p75
      %s78 = sadd.s32 %s77, 1
      %p81 = scmp.eq.s32.totalorder %s22, 3
      %p82 = scmp.ne.s32.totalorder %s77, %s79
      %p83 = scmp.eq.s32.totalorder %s22, 0
      %p84 = por %p82, %p83
      %p85 = scmp.ne.s32.totalorder %s77, %s79
      %p86 = scmp.eq.s32.totalorder %s27, 3
      %p87 = por %p85, %p86
      %p88 = scmp.ne.s32.totalorder %s79, %s80
      %p89 = scmp.eq.s32.totalorder %s27, 0
      %p90 = por %p88, %p89
      %p91 = scmp.ne.s32.totalorder %s79, %s80
      %p92 = scmp.eq.s32.totalorder %s28, 3
      %p93 = por %p91, %p92
      %p95 = scmp.ne.s32.totalorder %s80, %s94
      %p96 = scmp.eq.s32.totalorder %s28, 0
      %p97 = por %p95, %p96
      %s99 = sadd.s32 %s98, 1
      %p102 = scmp.eq.s32.totalorder %s22, 3
      %p103 = scmp.ne.s32.totalorder %s98, %s100
      %p104 = scmp.eq.s32.totalorder %s22, 0
      %p105 = por %p103, %p104
      %p106 = scmp.ne.s32.totalorder %s98, %s100
      %p107 = scmp.eq.s32.totalorder %s27, 3
      %p108 = por %p106, %p107
      %p109 = scmp.ne.s32.totalorder %s100, %s101
      %p110 = scmp.eq.s32.totalorder %s27, 0
      %p111 = por %p109, %p110
      %p112 = scmp.ne.s32.totalorder %s100, %s101
      %p113 = scmp.eq.s32.totalorder %s28, 3
      %p114 = por %p112, %p113
      %p116 = scmp.ne.s32.totalorder %s101, %s115
      %p117 = scmp.eq.s32.totalorder %s28, 0
      %p118 = por %p116, %p117
      %s119 = ssub.s32 %s22, %s29
      %p120 = scmp.eq.s32.totalorder %s119, 0
      %s122 = sadd.s32 %s121, 1
      %s123 = scalar_select %p120, %s121, %s122
      %p126 = pneg %p120
      %p127 = scmp.eq.s32.totalorder %s22, 3
      %p128 = por %p126, %p127
      %p129 = scmp.ne.s32.totalorder %s121, %s124
      %p130 = scmp.eq.s32.totalorder %s22, 0
      %p131 = por %p129, %p130
      %p132 = scmp.ne.s32.totalorder %s121, %s124
      %p133 = scmp.eq.s32.totalorder %s27, 3
      %p134 = por %p132, %p133
      %p135 = scmp.ne.s32.totalorder %s124, %s125
      %p136 = scmp.eq.s32.totalorder %s27, 0
      %p137 = por %p135, %p136
      %p138 = scmp.ne.s32.totalorder %s124, %s125
      %p139 = scmp.eq.s32.totalorder %s28, 3
      %p140 = por %p138, %p139
      %p142 = scmp.ne.s32.totalorder %s125, %s141
      %p143 = scmp.eq.s32.totalorder %s28, 0
      %p144 = por %p142, %p143
      %s145 = ssub.s32 %s22, %s29
      %p146 = scmp.eq.s32.totalorder %s145, 0
      %s148 = sadd.s32 %s147, 1
      %s149 = scalar_select %p146, %s147, %s148
      %p152 = pneg %p146
      %p153 = scmp.eq.s32.totalorder %s22, 3
      %p154 = por %p152, %p153
      %p155 = scmp.ne.s32.totalorder %s147, %s150
      %p156 = scmp.eq.s32.totalorder %s22, 0
      %p157 = por %p155, %p156
      %p158 = scmp.ne.s32.totalorder %s147, %s150
      %p159 = scmp.eq.s32.totalorder %s27, 3
      %p160 = por %p158, %p159
      %p161 = scmp.ne.s32.totalorder %s150, %s151
      %p162 = scmp.eq.s32.totalorder %s27, 0
      %p163 = por %p161, %p162
      %p164 = scmp.ne.s32.totalorder %s150, %s151
      %p165 = scmp.eq.s32.totalorder %s28, 3
      %p166 = por %p164, %p165
      %p168 = scmp.ne.s32.totalorder %s151, %s167
      %p169 = scmp.eq.s32.totalorder %s28, 0
      %p170 = por %p168, %p169
      %p171 = scmp.le.s32.totalorder 1, %s22
      %p172 = scmp.lt.s32.totalorder %s22, 5
      %p173 = pnand %p171, %p172
      %p174 = pneg %p173
      // Predicated region
      $region9: #{tpu_custom_call.1} parent=5 // pred_check
        _
      $region10: #{tpu_custom_call.1} parent=5 // pred_check_branch
        %176 = sbr.rel (%p173) target = $region12
      $region11: #{tpu_custom_call.1} parent=5 // pred_region
        %s177 = ssub.s32 %s22, 1
        // Predicated region
        $region13: #{tpu_custom_call.1} parent=11 // pred_check
          %p178 = pneg %p69
        $region14: #{tpu_custom_call.1} parent=11 // pred_check_branch
          %180 = sbr.rel (%p178) target = $region16
        $region15: #{tpu_custom_call.1} parent=11 // pred_region
          %s182 = ssub.s32 128, 128
          %183 = vsyncadd [#allocation6], %s182
          %s185 = sshll.u32 [#allocation5], 4
          %s186 = int_to_ptr.vmem [resolvable:$true] %s185
          %188 = dma.hbm_to_vmem [thread:$0]  %s1, 128, %s186, [#allocation6]
        $region16: #{tpu_custom_call.1} parent=11 // pred_fallthru
          _
        // Predicated region
        $region17: #{tpu_custom_call.1} parent=11 // pred_check
          %p189 = pneg %p90
        $region18: #{tpu_custom_call.1} parent=11 // pred_check_branch
          %191 = sbr.rel (%p189) target = $region20
        $region19: #{tpu_custom_call.1} parent=11 // pred_region
          %s193 = ssub.s32 4096, 4096
          %194 = vsyncadd [#allocation6], %s193
          %s195 = sshll.u32 [#allocation7], 4
          %s196 = int_to_ptr.vmem [resolvable:$true] %s195
          %201 = dma.hbm_to_vmem [thread:$0]  %s2, 4096, %s196, [#allocation6], 128, 128, 8
        $region20: #{tpu_custom_call.1} parent=11 // pred_fallthru
          _
        // Predicated region
        $region21: #{tpu_custom_call.1} parent=11 // pred_check
          %p202 = pneg %p111
        $region22: #{tpu_custom_call.1} parent=11 // pred_check_branch
          %204 = sbr.rel (%p202) target = $region24
        $region23: #{tpu_custom_call.1} parent=11 // pred_region
          _
        $region24: #{tpu_custom_call.1} parent=11 // pred_fallthru
          _
      $region12: #{tpu_custom_call.1} parent=5 // pred_fallthru
        _
      %p205 = scmp.lt.s32.totalorder %s22, 4
      // Predicated region
      $region25: #{tpu_custom_call.1} parent=5 // pred_check
        %p206 = pneg %p205
      $region26: #{tpu_custom_call.1} parent=5 // pred_check_branch
        %208 = sbr.rel (%p206) target = $region28
      $region27: #{tpu_custom_call.1} parent=5 // pred_region
        // Predicated region
        $region29: #{tpu_custom_call.1} parent=27 // pred_check
          %p209 = pneg %p42
        $region30: #{tpu_custom_call.1} parent=27 // pred_check_branch
          %211 = sbr.rel (%p209) target = $region32
        $region31: #{tpu_custom_call.1} parent=27 // pred_region
          #allocation12 [shape = 'u32[6]{0}', space=smem, size = 0x18, scoped, tag = 'DMA stride descriptor']
          %s212 = sand.u32 %s32, 1
          %s213 = scalar_lea.sflag [#allocation3], %s212
          %s214 = sand.u32 %s32, 1
          %s215 = smul.addr %s214, 384
          %s216 = scalar_lea.vmem [#allocation2], %s215
          %s217 = smul.u32 8, %s22
          %s219 = ssub.s32 6144, 6144
          %220 = vsyncadd %s213, %s219
          %s221 = smul.addr %s217, 2
          %s222 = smul.addr %s221, 128
          %s223 = scalar_lea.hbm %s0, %s222
          %s225 = sshll.u32 1, 14
          %s226 = sxor.u32 4294967295, %s225
          %s228 = sld [smem:[#allocation0]]
          %s229 = sadd.s32 2, %s228
          %s231 = sshll.u32 7, 26
          %s232 = sxor.u32 4294967295, %s231
          %s233 = sand.u32 0, %s232
          %s234 = sshll.u32 %s229, 26
          %s235 = sor.u32 %s233, %s234
          %s236 = sshll.u32 %s216, 4
          %s237 = int_to_ptr.vmem [resolvable:$true] %s236
          %243 = sst [smem:[#allocation12]] 8192
          %s244 = scalar_lea.smem [#allocation12], 1
          %245 = sst [smem:[%s244]] 2048
          %s246 = scalar_lea.smem [#allocation12], 2
          %247 = sst [smem:[%s246]] 8
          %s248 = scalar_lea.smem [#allocation12], 3
          %249 = sst [smem:[%s248]] 256
          %s250 = scalar_lea.smem [#allocation12], 4
          %251 = sst [smem:[%s250]] 256
          %s252 = scalar_lea.smem [#allocation12], 5
          %253 = sst [smem:[%s252]] 16
          %255 = dma.general %s223, 6144, %s237, %s213, [#allocation11], [#allocation12], %s235, 0
        $region32: #{tpu_custom_call.1} parent=27 // pred_fallthru
          _
      $region28: #{tpu_custom_call.1} parent=5 // pred_fallthru
        _
      %p256 = scmp.le.s32.totalorder 1, %s22
      %p257 = scmp.lt.s32.totalorder %s22, 5
      %p258 = pnand %p256, %p257
      %p259 = pneg %p258
      // Predicated region
      $region33: #{tpu_custom_call.1} parent=5 // pred_check
        _
      $region34: #{tpu_custom_call.1} parent=5 // pred_check_branch
        %261 = sbr.rel (%p258) target = $region36
      $region35: #{tpu_custom_call.1} parent=5 // pred_region
        %s262 = ssub.s32 %s22, 1
        %s263 = sand.u32 %s35, 1
        %s264 = scalar_lea.sflag [#allocation3], %s263
        %s265 = sand.u32 %s35, 1
        %s266 = smul.addr %s265, 384
        %s267 = scalar_lea.vmem [#allocation2], %s266
        // Predicated region
        $region37: #{tpu_custom_call.1} parent=35 // pred_check
          %p268 = pneg %p48
        $region38: #{tpu_custom_call.1} parent=35 // pred_check_branch
          %270 = sbr.rel (%p268) target = $region40
        $region39: #{tpu_custom_call.1} parent=35 // pred_region
          %271 = dma.done %s264, 6144
        $region40: #{tpu_custom_call.1} parent=35 // pred_fallthru
          _
        // Predicated region
        $region41: #{tpu_custom_call.1} parent=35 // pred_check
          %p272 = pneg %p69
        $region42: #{tpu_custom_call.1} parent=35 // pred_check_branch
          %274 = sbr.rel (%p272) target = $region44
        $region43: #{tpu_custom_call.1} parent=35 // pred_region
          %275 = dma.done [#allocation6], 128
        $region44: #{tpu_custom_call.1} parent=35 // pred_fallthru
          _
        // Predicated region
        $region45: #{tpu_custom_call.1} parent=35 // pred_check
          %p276 = pneg %p90
        $region46: #{tpu_custom_call.1} parent=35 // pred_check_branch
          %278 = sbr.rel (%p276) target = $region48
        $region47: #{tpu_custom_call.1} parent=35 // pred_region
          %279 = dma.done [#allocation6], 4096
        $region48: #{tpu_custom_call.1} parent=35 // pred_fallthru
          _
        %s280 = sand.u32 %s35, 1
        %s281 = scalar_lea.sflag [#allocation3], %s280
        %s282 = sand.u32 %s35, 1
        %s283 = smul.addr %s282, 384
        %s284 = scalar_lea.vmem [#allocation2], %s283
        %p285 = pneg %p48
        %p286 = pneg %p45
        %p287 = pneg %p69
        %p288 = pneg %p66
        %p289 = pneg %p90
        %p290 = pneg %p87
        %p291 = pneg %p111
        %p292 = pneg %p108
        %p293 = pneg %p137
        %p294 = pneg %p134
        %s295 = sand.u32 %s124, 1
        %s296 = scalar_lea.sflag [#allocation4], %s295
        %s297 = sand.u32 %s124, 1
        %s298 = smul.addr %s297, 64
        %s299 = scalar_lea.vmem [#allocation8], %s298
        %p300 = pneg %p163
        %p301 = pneg %p160
        %s302 = sand.u32 %s150, 1
        %s303 = scalar_lea.sflag [#allocation10], %s302
        %s304 = sand.u32 %s150, 1
        %s305 = smul.addr %s304, 128
        %s306 = scalar_lea.vmem [#allocation9], %s305
        %s307 = smul.u32 8, %s27
        %s308 = smul.u32 8, %s27
        %s309 = smul.u32 8, %s27
        %v310 = vld [vmem:[#allocation5] sm:$0x77]
        %v311 = vld [vmem:[%s267] sm:$0xff]
        %v312 = vld [vmem:[%s267 + $0x8] sm:$0xff]
        %v313 = vld [vmem:[%s267 + $0x10] sm:$0xff]
        %v314 = vld [vmem:[%s267 + $0x18] sm:$0xff]
        %v315 = vld [vmem:[%s267 + $0x20] sm:$0xff]
        %v316 = vld [vmem:[%s267 + $0x28] sm:$0xff]
        %v317 = vld [vmem:[%s267 + $0x30] sm:$0xff]
        %v318 = vld [vmem:[%s267 + $0x38] sm:$0xff]
        %v319 = vld [vmem:[%s267 + $0x40] sm:$0xff]
        %v320 = vld [vmem:[%s267 + $0x48] sm:$0xff]
        %v321 = vld [vmem:[%s267 + $0x50] sm:$0xff]
        %v322 = vld [vmem:[%s267 + $0x58] sm:$0xff]
        %v323 = vld [vmem:[%s267 + $0x60] sm:$0xff]
        %v324 = vld [vmem:[%s267 + $0x68] sm:$0xff]
        %v325 = vld [vmem:[%s267 + $0x70] sm:$0xff]
        %v326 = vld [vmem:[%s267 + $0x78] sm:$0xff]
        %v328 = vlaneseq
        %v329 = vshrl.u32 %v328, 7
        %v330 = vsub.s32 0, %v329
        %v331 = vrot.slane %v310, %v330
        %v332 = vlaneseq
        %v333 = vshrl.u32 %v332, 7
        %v334 = vsub.s32 4, %v333
        %v335 = vrot.slane %v310, %v334
        %v338 = vlaneseq
        %v339 = vshrl.u32 %v338, 7
        %v340 = vsub.s32 0, %v339
        %v341 = vrot.slane %v331, %v340
        %v342 = vlaneseq
        %v343 = vshrl.u32 %v342, 7
        %v344 = vsub.s32 0, %v343
        %v345 = vrot.slane %v335, %v344
        %v346 = vmul.f32 %v311, %v341
        %v347 = vmul.f32 %v312, %v345
        %v348 = vmul.f32 %v313, %v341
        %v349 = vmul.f32 %v314, %v345
        %v350 = vmul.f32 %v315, %v341
        %v351 = vmul.f32 %v316, %v345
        %v352 = vmul.f32 %v317, %v341
        %v353 = vmul.f32 %v318, %v345
        %v354 = vmul.f32 %v319, %v341
        %v355 = vmul.f32 %v320, %v345
        %v356 = vmul.f32 %v321, %v341
        %v357 = vmul.f32 %v322, %v345
        %v358 = vmul.f32 %v323, %v341
        %v359 = vmul.f32 %v324, %v345
        %v360 = vmul.f32 %v325, %v341
        %v361 = vmul.f32 %v326, %v345
        %s362 = scalar_lea.vmem %s267, 128 [#allocation2]
        %v363 = vld [vmem:[%s362] sm:$0xff]
        %v364 = vld [vmem:[%s362 + $0x8] sm:$0xff]
        %v365 = vld [vmem:[%s362 + $0x10] sm:$0xff]
        %v366 = vld [vmem:[%s362 + $0x18] sm:$0xff]
        %v367 = vld [vmem:[%s362 + $0x20] sm:$0xff]
        %v368 = vld [vmem:[%s362 + $0x28] sm:$0xff]
        %v369 = vld [vmem:[%s362 + $0x30] sm:$0xff]
        %v370 = vld [vmem:[%s362 + $0x38] sm:$0xff]
        %v371 = vld [vmem:[%s362 + $0x40] sm:$0xff]
        %v372 = vld [vmem:[%s362 + $0x48] sm:$0xff]
        %v373 = vld [vmem:[%s362 + $0x50] sm:$0xff]
        %v374 = vld [vmem:[%s362 + $0x58] sm:$0xff]
        %v375 = vld [vmem:[%s362 + $0x60] sm:$0xff]
        %v376 = vld [vmem:[%s362 + $0x68] sm:$0xff]
        %v377 = vld [vmem:[%s362 + $0x70] sm:$0xff]
        %v378 = vld [vmem:[%s362 + $0x78] sm:$0xff]
        %v379 = vlaneseq
        %v380 = vshrl.u32 %v379, 7
        %v381 = vsub.s32 1, %v380
        %v382 = vrot.slane %v310, %v381
        %v383 = vlaneseq
        %v384 = vshrl.u32 %v383, 7
        %v385 = vsub.s32 5, %v384
        %v386 = vrot.slane %v310, %v385
        %v389 = vlaneseq
        %v390 = vshrl.u32 %v389, 7
        %v391 = vsub.s32 1, %v390
        %v392 = vrot.slane %v382, %v391
        %v393 = vlaneseq
        %v394 = vshrl.u32 %v393, 7
        %v395 = vsub.s32 1, %v394
        %v396 = vrot.slane %v386, %v395
        %v397 = vmul.f32 %v363, %v392
        %v398 = vmul.f32 %v364, %v396
        %v399 = vmul.f32 %v365, %v392
        %v400 = vmul.f32 %v366, %v396
        %v401 = vmul.f32 %v367, %v392
        %v402 = vmul.f32 %v368, %v396
        %v403 = vmul.f32 %v369, %v392
        %v404 = vmul.f32 %v370, %v396
        %v405 = vmul.f32 %v371, %v392
        %v406 = vmul.f32 %v372, %v396
        %v407 = vmul.f32 %v373, %v392
        %v408 = vmul.f32 %v374, %v396
        %v409 = vmul.f32 %v375, %v392
        %v410 = vmul.f32 %v376, %v396
        %v411 = vmul.f32 %v377, %v392
        %v412 = vmul.f32 %v378, %v396
        %v413 = vadd.f32 %v346, %v397
        %v414 = vadd.f32 %v347, %v398
        %v415 = vadd.f32 %v348, %v399
        %v416 = vadd.f32 %v349, %v400
        %v417 = vadd.f32 %v350, %v401
        %v418 = vadd.f32 %v351, %v402
        %v419 = vadd.f32 %v352, %v403
        %v420 = vadd.f32 %v353, %v404
        %v421 = vadd.f32 %v354, %v405
        %v422 = vadd.f32 %v355, %v406
        %v423 = vadd.f32 %v356, %v407
        %v424 = vadd.f32 %v357, %v408
        %v425 = vadd.f32 %v358, %v409
        %v426 = vadd.f32 %v359, %v410
        %v427 = vadd.f32 %v360, %v411
        %v428 = vadd.f32 %v361, %v412
        %s429 = scalar_lea.vmem %s267, 256 [#allocation2]
        %v430 = vld [vmem:[%s429] sm:$0xff]
        %v431 = vld [vmem:[%s429 + $0x8] sm:$0xff]
        %v432 = vld [vmem:[%s429 + $0x10] sm:$0xff]
        %v433 = vld [vmem:[%s429 + $0x18] sm:$0xff]
        %v434 = vld [vmem:[%s429 + $0x20] sm:$0xff]
        %v435 = vld [vmem:[%s429 + $0x28] sm:$0xff]
        %v436 = vld [vmem:[%s429 + $0x30] sm:$0xff]
        %v437 = vld [vmem:[%s429 + $0x38] sm:$0xff]
        %v438 = vld [vmem:[%s429 + $0x40] sm:$0xff]
        %v439 = vld [vmem:[%s429 + $0x48] sm:$0xff]
        %v440 = vld [vmem:[%s429 + $0x50] sm:$0xff]
        %v441 = vld [vmem:[%s429 + $0x58] sm:$0xff]
        %v442 = vld [vmem:[%s429 + $0x60] sm:$0xff]
        %v443 = vld [vmem:[%s429 + $0x68] sm:$0xff]
        %v444 = vld [vmem:[%s429 + $0x70] sm:$0xff]
        %v445 = vld [vmem:[%s429 + $0x78] sm:$0xff]
        %v446 = vlaneseq
        %v447 = vshrl.u32 %v446, 7
        %v448 = vsub.s32 2, %v447
        %v449 = vrot.slane %v310, %v448
        %v450 = vlaneseq
        %v451 = vshrl.u32 %v450, 7
        %v452 = vsub.s32 6, %v451
        %v453 = vrot.slane %v310, %v452
        %v456 = vlaneseq
        %v457 = vshrl.u32 %v456, 7
        %v458 = vsub.s32 2, %v457
        %v459 = vrot.slane %v449, %v458
        %v460 = vlaneseq
        %v461 = vshrl.u32 %v460, 7
        %v462 = vsub.s32 2, %v461
        %v463 = vrot.slane %v453, %v462
        %v464 = vmul.f32 %v430, %v459
        %v465 = vmul.f32 %v431, %v463
        %v466 = vmul.f32 %v432, %v459
        %v467 = vmul.f32 %v433, %v463
        %v468 = vmul.f32 %v434, %v459
        %v469 = vmul.f32 %v435, %v463
        %v470 = vmul.f32 %v436, %v459
        %v471 = vmul.f32 %v437, %v463
        %v472 = vmul.f32 %v438, %v459
        %v473 = vmul.f32 %v439, %v463
        %v474 = vmul.f32 %v440, %v459
        %v475 = vmul.f32 %v441, %v463
        %v476 = vmul.f32 %v442, %v459
        %v477 = vmul.f32 %v443, %v463
        %v478 = vmul.f32 %v444, %v459
        %v479 = vmul.f32 %v445, %v463
        %v480 = vadd.f32 %v413, %v464
        %v481 = vadd.f32 %v414, %v465
        %v482 = vadd.f32 %v415, %v466
        %v483 = vadd.f32 %v416, %v467
        %v484 = vadd.f32 %v417, %v468
        %v485 = vadd.f32 %v418, %v469
        %v486 = vadd.f32 %v419, %v470
        %v487 = vadd.f32 %v420, %v471
        %v488 = vadd.f32 %v421, %v472
        %v489 = vadd.f32 %v422, %v473
        %v490 = vadd.f32 %v423, %v474
        %v491 = vadd.f32 %v424, %v475
        %v492 = vadd.f32 %v425, %v476
        %v493 = vadd.f32 %v426, %v477
        %v494 = vadd.f32 %v427, %v478
        %v495 = vadd.f32 %v428, %v479
        %496 = vst [vmem:[%s306] sm:$0xff] %v480
        %497 = vst [vmem:[%s306 + $0x8] sm:$0xff] %v481
        %498 = vst [vmem:[%s306 + $0x10] sm:$0xff] %v482
        %499 = vst [vmem:[%s306 + $0x18] sm:$0xff] %v483
        %500 = vst [vmem:[%s306 + $0x20] sm:$0xff] %v484
        %501 = vst [vmem:[%s306 + $0x28] sm:$0xff] %v485
        %502 = vst [vmem:[%s306 + $0x30] sm:$0xff] %v486
        %503 = vst [vmem:[%s306 + $0x38] sm:$0xff] %v487
        %504 = vst [vmem:[%s306 + $0x40] sm:$0xff] %v488
        %505 = vst [vmem:[%s306 + $0x48] sm:$0xff] %v489
        %506 = vst [vmem:[%s306 + $0x50] sm:$0xff] %v490
        %507 = vst [vmem:[%s306 + $0x58] sm:$0xff] %v491
        %508 = vst [vmem:[%s306 + $0x60] sm:$0xff] %v492
        %509 = vst [vmem:[%s306 + $0x68] sm:$0xff] %v493
        %510 = vst [vmem:[%s306 + $0x70] sm:$0xff] %v494
        %511 = vst [vmem:[%s306 + $0x78] sm:$0xff] %v495
        %v512 = vld [vmem:[#allocation7] sm:$0xff]
        %v513 = vld [vmem:[#allocation7 + $0x8] sm:$0xff]
        %v514 = vld [vmem:[#allocation7 + $0x10] sm:$0xff]
        %v515 = vld [vmem:[#allocation7 + $0x18] sm:$0xff]
        %v516 = vld [vmem:[#allocation7 + $0x20] sm:$0xff]
        %v517 = vld [vmem:[#allocation7 + $0x28] sm:$0xff]
        %v518 = vld [vmem:[#allocation7 + $0x30] sm:$0xff]
        %v519 = vld [vmem:[#allocation7 + $0x38] sm:$0xff]
        %v520 = vld [vmem:[#allocation7 + $0x40] sm:$0xff]
        %v521 = vld [vmem:[#allocation7 + $0x48] sm:$0xff]
        %v522 = vld [vmem:[#allocation7 + $0x50] sm:$0xff]
        %v523 = vld [vmem:[#allocation7 + $0x58] sm:$0xff]
        %v524 = vld [vmem:[#allocation7 + $0x60] sm:$0xff]
        %v525 = vld [vmem:[#allocation7 + $0x68] sm:$0xff]
        %v526 = vld [vmem:[#allocation7 + $0x70] sm:$0xff]
        %v527 = vld [vmem:[#allocation7 + $0x78] sm:$0xff]
        %v528 = vld [vmem:[#allocation7 + $0x80] sm:$0xff]
        %v529 = vld [vmem:[#allocation7 + $0x88] sm:$0xff]
        %v530 = vld [vmem:[#allocation7 + $0x90] sm:$0xff]
        %v531 = vld [vmem:[#allocation7 + $0x98] sm:$0xff]
        %v532 = vld [vmem:[#allocation7 + $0xa0] sm:$0xff]
        %v533 = vld [vmem:[#allocation7 + $0xa8] sm:$0xff]
        %v534 = vld [vmem:[#allocation7 + $0xb0] sm:$0xff]
        %v535 = vld [vmem:[#allocation7 + $0xb8] sm:$0xff]
        %v536 = vld [vmem:[#allocation7 + $0xc0] sm:$0xff]
        %v537 = vld [vmem:[#allocation7 + $0xc8] sm:$0xff]
        %v538 = vld [vmem:[#allocation7 + $0xd0] sm:$0xff]
        %v539 = vld [vmem:[#allocation7 + $0xd8] sm:$0xff]
        %v540 = vld [vmem:[#allocation7 + $0xe0] sm:$0xff]
        %v541 = vld [vmem:[#allocation7 + $0xe8] sm:$0xff]
        %v542 = vld [vmem:[#allocation7 + $0xf0] sm:$0xff]
        %v543 = vld [vmem:[#allocation7 + $0xf8] sm:$0xff]
        %v544 = vld [vmem:[%s3] sm:$0x1]
        %v546 = vlaneseq
        %v547 = vshrl.u32 %v546, 7
        %v548 = vsub.s32 0, %v547
        %v549 = vrot.slane %v544, %v548
        %551 = vmatprep.subr.mxu0 0.0
        %552 = vmatpush1.msra.mxu0 %v512
        %553 = vmatprep.subr.mxu0 0.0
        %554 = vmatpush1.msra.mxu0 %v513
        %555 = vmatprep.subr.mxu0 0.0
        %556 = vmatpush1.msra.mxu0 %v514
        %557 = vmatprep.subr.mxu0 0.0
        %558 = vmatpush1.msra.mxu0 %v515
        %559 = vmatprep.subr.mxu0 0.0
        %560 = vmatpush1.msra.mxu0 %v516
        %561 = vmatprep.subr.mxu0 0.0
        %562 = vmatpush1.msra.mxu0 %v517
        %563 = vmatprep.subr.mxu0 0.0
        %564 = vmatpush1.msra.mxu0 %v518
        %565 = vmatprep.subr.mxu0 0.0
        %566 = vmatpush1.msra.mxu0 %v519
        %567 = vmatprep.subr.mxu0 0.0
        %568 = vmatpush1.msra.mxu0 %v520
        %569 = vmatprep.subr.mxu0 0.0
        %570 = vmatpush1.msra.mxu0 %v521
        %571 = vmatprep.subr.mxu0 0.0
        %572 = vmatpush1.msra.mxu0 %v522
        %573 = vmatprep.subr.mxu0 0.0
        %574 = vmatpush1.msra.mxu0 %v523
        %575 = vmatprep.subr.mxu0 0.0
        %576 = vmatpush1.msra.mxu0 %v524
        %577 = vmatprep.subr.mxu0 0.0
        %578 = vmatpush1.msra.mxu0 %v525
        %579 = vmatprep.subr.mxu0 0.0
        %580 = vmatpush1.msra.mxu0 %v526
        %581 = vmatprep.subr.mxu0 0.0
        %582 = vmatpush1.msra.mxu0 %v527
        %583 = vmatprep.subr.mxu0 0.0
        %584 = vmatpush1.msra.mxu0 %v528
        %585 = vmatprep.subr.mxu0 0.0
        %586 = vmatpush1.msra.mxu0 %v529
        %587 = vmatprep.subr.mxu0 0.0
        %588 = vmatpush1.msra.mxu0 %v530
        %589 = vmatprep.subr.mxu0 0.0
        %590 = vmatpush1.msra.mxu0 %v531
        %591 = vmatprep.subr.mxu0 0.0
        %592 = vmatpush1.msra.mxu0 %v532
        %593 = vmatprep.subr.mxu0 0.0
        %594 = vmatpush1.msra.mxu0 %v533
        %595 = vmatprep.subr.mxu0 0.0
        %596 = vmatpush1.msra.mxu0 %v534
        %597 = vmatprep.subr.mxu0 0.0
        %598 = vmatpush1.msra.mxu0 %v535
        %599 = vmatprep.subr.mxu0 0.0
        %600 = vmatpush1.msra.mxu0 %v536
        %601 = vmatprep.subr.mxu0 0.0
        %602 = vmatpush1.msra.mxu0 %v537
        %603 = vmatprep.subr.mxu0 0.0
        %604 = vmatpush1.msra.mxu0 %v538
        %605 = vmatprep.subr.mxu0 0.0
        %606 = vmatpush1.msra.mxu0 %v539
        %607 = vmatprep.subr.mxu0 0.0
        %608 = vmatpush1.msra.mxu0 %v540
        %609 = vmatprep.subr.mxu0 0.0
        %610 = vmatpush1.msra.mxu0 %v541
        %611 = vmatprep.subr.mxu0 0.0
        %612 = vmatpush1.msra.mxu0 %v542
        %613 = vmatprep.subr.mxu0 0.0
        %614 = vmatpush1.msra.mxu0 %v543
        %615 = vmatprep.mubr.f32.mxu0 %v481
        %616 = vmatmul.mubr.f32.gmra.mrb[0].mxu0 %v480
        %v617 = vpop.f32.mrb[0].mxu0
        %v618 = vadd.f32 %v549, %v617
        %v619 = vpop.f32.mrb[0].mxu0
        %620 = vmatprep.mubr.f32.mxu0 %v483
        %621 = vmatmul.mubr.f32.gmra.mrb[0].mxu0 %v482
        %v622 = vpop.f32.mrb[0].mxu0
        %v623 = vadd.f32 %v549, %v622
        %v624 = vpop.f32.mrb[0].mxu0
        %625 = vmatprep.mubr.f32.mxu0 %v485
        %626 = vmatmul.mubr.f32.gmra.mrb[0].mxu0 %v484
        %v627 = vpop.f32.mrb[0].mxu0
        %v628 = vadd.f32 %v549, %v627
        %v629 = vpop.f32.mrb[0].mxu0
        %630 = vmatprep.mubr.f32.mxu0 %v487
        %631 = vmatmul.mubr.f32.gmra.mrb[0].mxu0 %v486
        %v632 = vpop.f32.mrb[0].mxu0
        %v633 = vadd.f32 %v549, %v632
        %v634 = vpop.f32.mrb[0].mxu0
        %635 = vmatprep.mubr.f32.mxu0 %v489
        %636 = vmatmul.mubr.f32.gmra.mrb[0].mxu0 %v488
        %v637 = vpop.f32.mrb[0].mxu0
        %v638 = vadd.f32 %v549, %v637
        %v639 = vpop.f32.mrb[0].mxu0
        %640 = vmatprep.mubr.f32.mxu0 %v491
        %641 = vmatmul.mubr.f32.gmra.mrb[0].mxu0 %v490
        %v642 = vpop.f32.mrb[0].mxu0
        %v643 = vadd.f32 %v549, %v642
        %v644 = vpop.f32.mrb[0].mxu0
        %645 = vmatprep.mubr.f32.mxu0 %v493
        %646 = vmatmul.mubr.f32.gmra.mrb[0].mxu0 %v492
        %v647 = vpop.f32.mrb[0].mxu0
        %v648 = vadd.f32 %v549, %v647
        %v649 = vpop.f32.mrb[0].mxu0
        %650 = vmatprep.mubr.f32.mxu0 %v495
        %651 = vmatmul.mubr.f32.gmra.mrb[0].mxu0 %v494
        %v652 = vpop.f32.mrb[0].mxu0
        %v653 = vadd.f32 %v549, %v652
        %v654 = vpop.f32.mrb[0].mxu0
        %655 = vdwg.mxu0
        %656 = vst [vmem:[%s299] sm:$0xff] %v618
        %657 = vst [vmem:[%s299 + $0x8] sm:$0xff] %v623
        %658 = vst [vmem:[%s299 + $0x10] sm:$0xff] %v628
        %659 = vst [vmem:[%s299 + $0x18] sm:$0xff] %v633
        %660 = vst [vmem:[%s299 + $0x20] sm:$0xff] %v638
        %661 = vst [vmem:[%s299 + $0x28] sm:$0xff] %v643
        %662 = vst [vmem:[%s299 + $0x30] sm:$0xff] %v648
        %663 = vst [vmem:[%s299 + $0x38] sm:$0xff] %v653
        %s664 = sand.u32 %s124, 1
        %s665 = scalar_lea.sflag [#allocation4], %s664
        %s666 = sand.u32 %s124, 1
        %s667 = smul.addr %s666, 64
        %s668 = scalar_lea.vmem [#allocation8], %s667
        %s669 = sand.u32 %s150, 1
        %s670 = scalar_lea.sflag [#allocation10], %s669
        %s671 = sand.u32 %s150, 1
        %s672 = smul.addr %s671, 128
        %s673 = scalar_lea.vmem [#allocation9], %s672
        // Predicated region
        $region49: #{tpu_custom_call.1} parent=35 // pred_check
          %p674 = pneg %p134
        $region50: #{tpu_custom_call.1} parent=35 // pred_check_branch
          %676 = sbr.rel (%p674) target = $region52
        $region51: #{tpu_custom_call.1} parent=35 // pred_region
          %s677 = smul.u32 8, %s27
          %s679 = ssub.s32 1024, 1024
          %680 = vsyncadd %s665, %s679
          %s681 = smul.addr %s677, 128
          %s682 = scalar_lea.hbm %s4, %s681
          %s683 = sshll.u32 %s668, 4
          %s684 = int_to_ptr.vmem [resolvable:$true] %s683
          %689 = dma.vmem_to_hbm [thread:$0]  %s684, 1024, %s682, %s665, 128, 128, 8
        $region52: #{tpu_custom_call.1} parent=35 // pred_fallthru
          _
        // Predicated region
        $region53: #{tpu_custom_call.1} parent=35 // pred_check
          %p690 = pneg %p160
        $region54: #{tpu_custom_call.1} parent=35 // pred_check_branch
          %692 = sbr.rel (%p690) target = $region56
        $region55: #{tpu_custom_call.1} parent=35 // pred_region
          %s693 = smul.u32 8, %s27
          %s695 = ssub.s32 2048, 2048
          %696 = vsyncadd %s670, %s695
          %s697 = smul.addr %s693, 2
          %s698 = smul.addr %s697, 128
          %s699 = scalar_lea.hbm %s5, %s698
          %s700 = sshll.u32 %s673, 4
          %s701 = int_to_ptr.vmem [resolvable:$true] %s700
          %706 = dma.vmem_to_hbm [thread:$0]  %s701, 2048, %s699, %s670, 256, 256, 16
        $region56: #{tpu_custom_call.1} parent=35 // pred_fallthru
          _
      $region36: #{tpu_custom_call.1} parent=5 // pred_fallthru
        _
      %p707 = scmp.le.s32.totalorder 2, %s22
      // Predicated region
      $region57: #{tpu_custom_call.1} parent=5 // pred_check
        %p708 = pneg %p707
      $region58: #{tpu_custom_call.1} parent=5 // pred_check_branch
        %710 = sbr.rel (%p708) target = $region60
      $region59: #{tpu_custom_call.1} parent=5 // pred_region
        %s711 = ssub.s32 %s22, 2
        // Predicated region
        $region61: #{tpu_custom_call.1} parent=59 // pred_check
          %p712 = pneg %p140
        $region62: #{tpu_custom_call.1} parent=59 // pred_check_branch
          %714 = sbr.rel (%p712) target = $region64
        $region63: #{tpu_custom_call.1} parent=59 // pred_region
          %s715 = sand.u32 %s125, 1
          %s716 = scalar_lea.sflag [#allocation4], %s715
          %s717 = sand.u32 %s125, 1
          %s718 = smul.addr %s717, 64
          %s719 = scalar_lea.vmem [#allocation8], %s718
          %720 = dma.done %s716, 1024
        $region64: #{tpu_custom_call.1} parent=59 // pred_fallthru
          _
        // Predicated region
        $region65: #{tpu_custom_call.1} parent=59 // pred_check
          %p721 = pneg %p166
        $region66: #{tpu_custom_call.1} parent=59 // pred_check_branch
          %723 = sbr.rel (%p721) target = $region68
        $region67: #{tpu_custom_call.1} parent=59 // pred_region
          %s724 = sand.u32 %s151, 1
          %s725 = scalar_lea.sflag [#allocation10], %s724
          %s726 = sand.u32 %s151, 1
          %s727 = smul.addr %s726, 128
          %s728 = scalar_lea.vmem [#allocation9], %s727
          %729 = dma.done %s725, 2048
        $region68: #{tpu_custom_call.1} parent=59 // pred_fallthru
          _
      $region60: #{tpu_custom_call.1} parent=5 // pred_fallthru
        _
    $region6: #{tpu_custom_call.1} parent=1 // loop_footer
      %s26 = sadd.s32 1, %s22
    $region7: #{tpu_custom_call.1} parent=1 // loop_footer_branch
      %21 = sbr.rel target = $region3
    $region8: #{tpu_custom_call.1} parent=1 // loop_exit
      _
    %730 = vsyncpa [#allocation3], 1
    %s731 = scalar_lea.sflag [#allocation3], 1
    %732 = vsyncpa %s731, 1
    %733 = vsyncpa [#allocation6], 1
    %734 = vsyncpa [#allocation4], 1
    %s735 = scalar_lea.sflag [#allocation4], 1
    %736 = vsyncpa %s735, 1
    %737 = vsyncpa [#allocation10], 1
    %s738 = scalar_lea.sflag [#allocation10], 1
    %739 = vsyncpa %s738, 1

</llo_original>
